<compile_context>
chip_gen: v6e
topology: v6e:2x2x1
jax: 0.10.0
libtpu: 0.0.40
codegen_flags: <defaults>
</compile_context>

<pallas_src>
import functools

import jax
import jax.numpy as jnp
import numpy as np
from jax import lax
from jax.experimental import pallas as pl
from jax.experimental.pallas import tpu as pltpu


def _round_up(x, m):
    return ((x + m - 1) // m) * m


def _cl_loss_kernel(labels_ref, counts_ref, invcnt_ref, proto_ref, feat_hbm,  # inputs
                    loss_ref,                                                 # output
                    prim_ref, stage_ref, sem,                                 # scratch
                    *, T, w, P, M_pad):
    """labels_ref: SMEM int32 (P*M_pad,)  — compacted global row ids (valid first)
       counts_ref: SMEM int32 (P,)        — #valid rows per primitive
       invcnt_ref: SMEM f32  (P,)         — 1/count (0 if empty)
       proto_ref : VMEM f32  (P, C_pad)
       feat_hbm  : HBM  f32  (N*B, C_pad)
       prim_ref  : VMEM f32  (P, C_pad)   — normalized per-primitive prototype
       stage_ref : VMEM f32  (2, M_pad, C_pad) — double-buffered gather tile
       sem       : DMA sems  (2, M_pad)"""

    def row_copy(p, m, slot):
        # Single construction point used for BOTH start and wait so the
        # descriptors can never drift apart.
        idx = jnp.maximum(labels_ref[p * M_pad + m], 0)
        return pltpu.make_async_copy(
            feat_hbm.at[pl.ds(idx, 1), :],
            stage_ref.at[slot, pl.ds(m, 1)],
            sem.at[slot, m])

    def fetch_tile(p, slot):
        # Issue all valid-row DMAs for primitive p back-to-back (kept in flight).
        cnt = counts_ref[p]

        def issue(m, c):
            row_copy(p, m, slot).start()
            return c

        lax.fori_loop(0, cnt, issue, 0)

    def wait_tile(p, slot):
        cnt = counts_ref[p]

        def wait_one(m, c):
            row_copy(p, m, slot).wait()
            return c

        lax.fori_loop(0, cnt, wait_one, 0)

    # Prime the pipeline with primitive 0.
    fetch_tile(0, 0)

    inv_T = 1.0 / T

    def body(p, carry):
        slot = jnp.bitwise_and(p, 1)

        # Prefetch the next primitive's rows while we wait/compute on this one.
        @pl.when(p + 1 < P)
        def _():
            fetch_tile(p + 1, 1 - slot)

        cnt = counts_ref[p]          # scalar SMEM reads before the DMA waits
        inv_cnt = invcnt_ref[p]
        wait_tile(p, slot)

        tile = stage_ref[slot]                                       # (M_pad, C_pad)
        rid = lax.broadcasted_iota(jnp.int32, (M_pad, 1), 0)
        valid = rid < cnt                                            # (M_pad, 1)
        rows = jnp.where(valid, tile, 0.0)                           # select kills stale/NaN rows
        nrm2 = jnp.sum(rows * rows, axis=1, keepdims=True)           # (M_pad, 1)
        scale = jnp.where(valid, lax.rsqrt(nrm2), 0.0)               # no eps (matches torch)
        ssum = jnp.sum(rows * scale, axis=0, keepdims=True)          # (1, C_pad)

        proto_row = proto_ref[pl.ds(p, 1), :]                        # (1, C_pad)
        # Mean of normalized features; fall back to prototype[p] if no valid point.
        mean = jnp.where(cnt > 0, ssum * inv_cnt, proto_row)
        prim = mean * lax.rsqrt(jnp.sum(mean * mean, axis=1, keepdims=True))
        prim_ref[pl.ds(p, 1), :] = prim
        return carry

    lax.fori_loop(0, P, body, 0)

    # ---- finalize: similarity against prototypes, InfoNCE loss ----
    prim = prim_ref[...]                                             # (P, C_pad)
    proto = proto_ref[...]                                           # (P, C_pad)
    sim = lax.dot_general(prim, proto, (((1,), (1,)), ((), ())),
                          preferred_element_type=jnp.float32) * inv_T   # (P, P)
    diag = jnp.sum(prim * proto, axis=1, keepdims=True) * inv_T         # (P, 1)

    # -log(exp(diag) / sum_j exp(sim_j)) == logsumexp(sim) - diag  (stable form)
    rmax = jnp.max(sim, axis=1, keepdims=True)
    lse = jnp.log(jnp.sum(jnp.exp(sim - rmax), axis=1, keepdims=True)) + rmax
    term = lse - diag                                                    # (P, 1)

    loss_ref[...] = jnp.sum(term, axis=0, keepdims=True) * (w / P)       # (1, 1)


def primitive_cl_loss(primlabel, features, prototype, *, temperature=0.2, weight=0.1):
    """primlabel: int32 (B, P, K) with point indices in [0, N) or -1.
    features:  f32 (N, B, C)   (points, batch, channels)
    prototype: f32 (P, C)
    Returns the scalar primitive_protoNCE loss."""
    B, P, K = primlabel.shape
    N, _, C = features.shape
    M = B * K
    M_pad = max(8, _round_up(M, 8))
    C_pad = max(128, _round_up(C, 128))

    # (N, B, C) -> (N*B, C) is a free contiguous reshape; row of (point i, batch b)
    # lives at global id i*B + b (no HBM transpose copy).  Pad channels to a
    # lane-dense multiple of 128 (no-op when C already is, e.g. in_c=256).
    feats_flat = features.reshape(N * B, C)
    if C_pad != C:
        feats_flat = jnp.pad(feats_flat, ((0, 0), (0, C_pad - C)))
        proto_pad = jnp.pad(prototype, ((0, 0), (0, C_pad - C)))
    else:
        proto_pad = prototype

    offs = jnp.arange(B, dtype=jnp.int32)[:, None, None]                 # (B,1,1)
    valid = primlabel >= 0                                               # (B,P,K)
    glabels = jnp.where(valid, primlabel * B + offs, -1)                 # (B,P,K)
    glabels = jnp.transpose(glabels, (1, 0, 2)).reshape(P, M)            # (P, M)
    valid_pm = jnp.transpose(valid, (1, 0, 2)).reshape(P, M)             # (P, M)

    # Compact: valid entries to the front of each primitive's row so the kernel
    # only DMAs / touches counts[p] rows (order does not matter for the mean).
    order = jnp.argsort(jnp.logical_not(valid_pm).astype(jnp.int32), axis=1)
    glabels = jnp.take_along_axis(glabels, order, axis=1)
    if M_pad != M:
        glabels = jnp.pad(glabels, ((0, 0), (0, M_pad - M)), constant_values=-1)
    glabels_flat = glabels.reshape(P * M_pad).astype(jnp.int32)

    counts = jnp.sum(valid_pm, axis=1).astype(jnp.int32)                 # (P,)
    inv_counts = jnp.where(counts > 0,
                           1.0 / jnp.maximum(counts, 1).astype(jnp.float32),
                           0.0).astype(jnp.float32)

    # Raise the scoped-VMEM limit only if the staging / accumulator buffers are
    # actually large; keep the cap conservative (<= 48 MiB works on v5e/v6e/v7x).
    vmem_needed = 4 * (2 * M_pad * C_pad + 2 * P * C_pad) + 8 * P * M_pad
    vmem_limit = None
    if vmem_needed > (12 << 20):
        vmem_limit = int(min(2 * vmem_needed + (8 << 20), 48 << 20))
    # TODO(synk): if vmem_needed exceeds the cap, tile the per-primitive gather
    # over row blocks instead of one (M_pad, C_pad) tile.

    kernel = functools.partial(_cl_loss_kernel, T=float(temperature),
                               w=float(weight), P=P, M_pad=M_pad)
    loss = pl.pallas_call(
        kernel,
        out_shape=jax.ShapeDtypeStruct((1, 1), jnp.float32),
        in_specs=[pl.BlockSpec(memory_space=pltpu.MemorySpace.SMEM),   # labels (scalars only)
                  pl.BlockSpec(memory_space=pltpu.MemorySpace.SMEM),   # counts (P,)
                  pl.BlockSpec(memory_space=pltpu.MemorySpace.SMEM),   # 1/count (P,)
                  pl.BlockSpec(memory_space=pltpu.MemorySpace.VMEM),   # prototype (P, C_pad)
                  pl.BlockSpec(memory_space=pl.ANY)],                  # features stay in HBM
        out_specs=pl.BlockSpec(memory_space=pltpu.MemorySpace.VMEM),
        scratch_shapes=[pltpu.VMEM((P, C_pad), jnp.float32),           # normalized prim protos
                        pltpu.VMEM((2, M_pad, C_pad), jnp.float32),    # double-buffered tile
                        pltpu.SemaphoreType.DMA((2, M_pad))],
        compiler_params=pltpu.CompilerParams(vmem_limit_bytes=vmem_limit),
    )(glabels_flat, counts, inv_counts, proto_pad, feats_flat)
    return loss[0, 0]


def _reference_loss(primlabel, features, prototype, T=0.2, w=0.1):
    """Pure-numpy mirror of the PyTorch forward (for correctness check)."""
    primlabel = np.asarray(primlabel)
    features = np.asarray(features, np.float32)
    prototype = np.asarray(prototype, np.float32)
    B, P, K = primlabel.shape
    feats = np.transpose(features, (1, 0, 2))  # (B, N, C)
    prim_proto = np.zeros((P, prototype.shape[1]), np.float32)
    for p in range(P):
        rows = []
        for b in range(B):
            for i in primlabel[b, p]:
                if i != -1:
                    f = feats[b, i]
                    rows.append(f / np.linalg.norm(f))
        if len(rows) == 0:
            rows = [prototype[p]]
        one = np.mean(np.stack(rows, 0), axis=0)
        prim_proto[p] = one / np.linalg.norm(one)
    sim = prim_proto @ prototype.T / T
    esim = np.exp(sim)
    pos = np.diagonal(esim)
    tot = np.sum(esim, axis=1)
    term = -np.log(pos / tot)
    return float(np.sum(term) / P * w)


if __name__ == "__main__":
    # Small synthetic shapes consistent with the module's forward.
    B, N, C, P, K = 2, 16, 32, 4, 8

    key = jax.random.PRNGKey(0)
    kf, kp, kl = jax.random.split(key, 3)
    features = jax.random.normal(kf, (N, B, C), dtype=jnp.float32)   # (points, batch, channels)
    prototype = jax.random.normal(kp, (P, C), dtype=jnp.float32)
    primlabel = jax.random.randint(kl, (B, P, K), -1, N, dtype=jnp.int32)
    # Make one primitive entirely empty to exercise the prototype fallback.
    primlabel = primlabel.at[:, P - 1, :].set(-1)

    loss = primitive_cl_loss(primlabel, features, prototype,
                             temperature=0.2, weight=0.1)
    loss = jax.block_until_ready(loss)

    ref = _reference_loss(primlabel, features, prototype, T=0.2, w=0.1)
    assert np.allclose(float(loss), ref, rtol=1e-4, atol=1e-5), (float(loss), ref)
    print("KERNEL_OK")
</pallas_src>

<mosaic_0001>
module attributes {stable_mosaic.version = 11 : i64} {
  func.func @_cl_loss_kernel(%arg0: memref<64xi32, #tpu.memory_space<smem>>, %arg1: memref<4xi32, #tpu.memory_space<smem>>, %arg2: memref<4xf32, #tpu.memory_space<smem>>, %arg3: memref<4x128xf32, #tpu.memory_space<vmem>>, %arg4: memref<32x128xf32, #tpu.memory_space<any>>, %arg5: memref<1x1xf32, #tpu.memory_space<vmem>>, %arg6: memref<4x128xf32, #tpu.memory_space<vmem>>, %arg7: memref<2x16x128xf32, #tpu.memory_space<vmem>>, %arg8: memref<2x16x!tpu.dma_semaphore, #tpu.memory_space<semaphore_mem>>) attributes {dimension_semantics = [], scalar_prefetch = 0 : i64, scratch_operands = 3 : i64, tpu.core_type = #tpu.core_type<tc>} {
    %c0 = arith.constant 0 : index
    %0 = memref.load %arg1[%c0] : memref<4xi32, #tpu.memory_space<smem>>
    %c0_i32 = arith.constant 0 : i32
    %c0_i32_0 = arith.constant 0 : i32
    %1 = arith.subi %0, %c0_i32_0 : i32
    %2 = arith.addi %c0_i32_0, %1 : i32
    %c1_i32 = arith.constant 1 : i32
    scf.for %arg9 = %c0_i32_0 to %2 step %c1_i32  : i32 {
      %c0_i32_17 = arith.constant 0 : i32
      %29 = arith.addi %c0_i32_17, %arg9 : i32
      %30 = arith.index_cast %29 : i32 to index
      %31 = memref.load %arg0[%30] : memref<64xi32, #tpu.memory_space<smem>>
      %c0_i32_18 = arith.constant 0 : i32
      %32 = arith.maxsi %31, %c0_i32_18 : i32
      %c0_i32_19 = arith.constant 0 : i32
      %c0_i32_20 = arith.constant 0 : i32
      %c0_i32_21 = arith.constant 0 : i32
      %33 = tpu.memref_slice %arg4[%32, %c0_i32_21] : memref<32x128xf32, #tpu.memory_space<any>> -> memref<1x128xf32, #tpu.memory_space<any>>
      %c0_i32_22 = arith.constant 0 : i32
      %34 = tpu.memref_slice %arg7[%c0_i32_19, %arg9, %c0_i32_22] : memref<2x16x128xf32, #tpu.memory_space<vmem>> -> memref<1x1x128xf32, #tpu.memory_space<vmem>>
      %35 = tpu.memref_squeeze %34 : memref<1x1x128xf32, #tpu.memory_space<vmem>> -> memref<1x128xf32, #tpu.memory_space<vmem>>
      %36 = tpu.memref_slice %arg8[%c0_i32_20, %arg9] : memref<2x16x!tpu.dma_semaphore, #tpu.memory_space<semaphore_mem>> -> memref<1x1x!tpu.dma_semaphore, #tpu.memory_space<semaphore_mem>>
      %37 = tpu.memref_squeeze %36 : memref<1x1x!tpu.dma_semaphore, #tpu.memory_space<semaphore_mem>> -> memref<!tpu.dma_semaphore, #tpu.memory_space<semaphore_mem>>
      tpu.enqueue_dma source(%33 : memref<1x128xf32, #tpu.memory_space<any>>) target(%35 : memref<1x128xf32, #tpu.memory_space<vmem>>) target_semaphore(%37 : memref<!tpu.dma_semaphore, #tpu.memory_space<semaphore_mem>>)
    }
    %c0_i32_1 = arith.constant 0 : i32
    %c4_i32 = arith.constant 4 : i32
    %3 = arith.addi %c0_i32_1, %c4_i32 : i32
    %c1_i32_2 = arith.constant 1 : i32
    scf.for %arg9 = %c0_i32_1 to %3 step %c1_i32_2  : i32 {
      %c1_i32_17 = arith.constant 1 : i32
      %29 = arith.andi %arg9, %c1_i32_17 : i32
      %c1_i32_18 = arith.constant 1 : i32
      %30 = arith.addi %arg9, %c1_i32_18 : i32
      %c4_i32_19 = arith.constant 4 : i32
      %31 = arith.cmpi slt, %30, %c4_i32_19 : i32
      %32 = arith.extui %31 : i1 to i32
      %c0_i32_20 = arith.constant 0 : i32
      %33 = arith.cmpi ne, %32, %c0_i32_20 : i32
      scf.if %33 {
        %c1_i32_34 = arith.constant 1 : i32
        %76 = arith.addi %arg9, %c1_i32_34 : i32
        %c1_i32_35 = arith.constant 1 : i32
        %77 = arith.subi %c1_i32_35, %29 : i32
        %78 = arith.index_cast %76 : i32 to index
        %79 = memref.load %arg1[%78] : memref<4xi32, #tpu.memory_space<smem>>
        %c0_i32_36 = arith.constant 0 : i32
        %c0_i32_37 = arith.constant 0 : i32
        %80 = arith.subi %79, %c0_i32_37 : i32
        %81 = arith.addi %c0_i32_37, %80 : i32
        %c1_i32_38 = arith.constant 1 : i32
        scf.for %arg10 = %c0_i32_37 to %81 step %c1_i32_38  : i32 {
          %c16_i32 = arith.constant 16 : i32
          %82 = arith.muli %76, %c16_i32 : i32
          %83 = arith.addi %82, %arg10 : i32
          %84 = arith.index_cast %83 : i32 to index
          %85 = memref.load %arg0[%84] : memref<64xi32, #tpu.memory_space<smem>>
          %c0_i32_39 = arith.constant 0 : i32
          %86 = arith.maxsi %85, %c0_i32_39 : i32
          %c0_i32_40 = arith.constant 0 : i32
          %87 = tpu.memref_slice %arg4[%86, %c0_i32_40] : memref<32x128xf32, #tpu.memory_space<any>> -> memref<1x128xf32, #tpu.memory_space<any>>
          %c0_i32_41 = arith.constant 0 : i32
          %88 = tpu.memref_slice %arg7[%77, %arg10, %c0_i32_41] : memref<2x16x128xf32, #tpu.memory_space<vmem>> -> memref<1x1x128xf32, #tpu.memory_space<vmem>>
          %89 = tpu.memref_squeeze %88 : memref<1x1x128xf32, #tpu.memory_space<vmem>> -> memref<1x128xf32, #tpu.memory_space<vmem>>
          %90 = tpu.memref_slice %arg8[%77, %arg10] : memref<2x16x!tpu.dma_semaphore, #tpu.memory_space<semaphore_mem>> -> memref<1x1x!tpu.dma_semaphore, #tpu.memory_space<semaphore_mem>>
          %91 = tpu.memref_squeeze %90 : memref<1x1x!tpu.dma_semaphore, #tpu.memory_space<semaphore_mem>> -> memref<!tpu.dma_semaphore, #tpu.memory_space<semaphore_mem>>
          tpu.enqueue_dma source(%87 : memref<1x128xf32, #tpu.memory_space<any>>) target(%89 : memref<1x128xf32, #tpu.memory_space<vmem>>) target_semaphore(%91 : memref<!tpu.dma_semaphore, #tpu.memory_space<semaphore_mem>>)
        }
      } else {
      }
      %34 = arith.index_cast %arg9 : i32 to index
      %35 = memref.load %arg1[%34] : memref<4xi32, #tpu.memory_space<smem>>
      %36 = arith.index_cast %arg9 : i32 to index
      %37 = memref.load %arg2[%36] : memref<4xf32, #tpu.memory_space<smem>>
      %38 = arith.index_cast %arg9 : i32 to index
      %39 = memref.load %arg1[%38] : memref<4xi32, #tpu.memory_space<smem>>
      %c0_i32_21 = arith.constant 0 : i32
      %c0_i32_22 = arith.constant 0 : i32
      %40 = arith.subi %39, %c0_i32_22 : i32
      %41 = arith.addi %c0_i32_22, %40 : i32
      %c1_i32_23 = arith.constant 1 : i32
      scf.for %arg10 = %c0_i32_22 to %41 step %c1_i32_23  : i32 {
        %c16_i32 = arith.constant 16 : i32
        %76 = arith.muli %arg9, %c16_i32 : i32
        %77 = arith.addi %76, %arg10 : i32
        %78 = arith.index_cast %77 : i32 to index
        %79 = memref.load %arg0[%78] : memref<64xi32, #tpu.memory_space<smem>>
        %c0_i32_34 = arith.constant 0 : i32
        %80 = arith.maxsi %79, %c0_i32_34 : i32
        %c0_i32_35 = arith.constant 0 : i32
        %81 = tpu.memref_slice %arg4[%80, %c0_i32_35] : memref<32x128xf32, #tpu.memory_space<any>> -> memref<1x128xf32, #tpu.memory_space<any>>
        %c0_i32_36 = arith.constant 0 : i32
        %82 = tpu.memref_slice %arg7[%29, %arg10, %c0_i32_36] : memref<2x16x128xf32, #tpu.memory_space<vmem>> -> memref<1x1x128xf32, #tpu.memory_space<vmem>>
        %83 = tpu.memref_squeeze %82 : memref<1x1x128xf32, #tpu.memory_space<vmem>> -> memref<1x128xf32, #tpu.memory_space<vmem>>
        %84 = tpu.memref_slice %arg8[%29, %arg10] : memref<2x16x!tpu.dma_semaphore, #tpu.memory_space<semaphore_mem>> -> memref<1x1x!tpu.dma_semaphore, #tpu.memory_space<semaphore_mem>>
        %85 = tpu.memref_squeeze %84 : memref<1x1x!tpu.dma_semaphore, #tpu.memory_space<semaphore_mem>> -> memref<!tpu.dma_semaphore, #tpu.memory_space<semaphore_mem>>
        tpu.wait_dma2 semaphore(%85 : memref<!tpu.dma_semaphore, #tpu.memory_space<semaphore_mem>>) src(%81 : memref<1x128xf32, #tpu.memory_space<any>>) dst(%83 : memref<1x128xf32, #tpu.memory_space<vmem>>)
      }
      %42 = arith.index_cast %29 : i32 to index
      %c0_24 = arith.constant 0 : index
      %c0_25 = arith.constant 0 : index
      %43 = vector.load %arg7[%42, %c0_24, %c0_25] : memref<2x16x128xf32, #tpu.memory_space<vmem>>, vector<1x16x128xf32>
      %44 = vector.shape_cast %43 : vector<1x16x128xf32> to vector<16x128xf32>
      %45 = tpu.iota {dimensions = array<i32: 0>} : vector<16x1xi32>
      %46 = vector.broadcast %35 : i32 to vector<16x1xi32>
      %47 = arith.cmpi slt, %45, %46 : vector<16x1xi32>
      %cst_26 = arith.constant 0.000000e+00 : f32
      %48 = vector.shape_cast %47 : vector<16x1xi1> to vector<16x1xi1>
      %49 = vector.broadcast %48 : vector<16x1xi1> to vector<16x128xi1>
      %50 = vector.broadcast %cst_26 : f32 to vector<16x128xf32>
      %51 = arith.select %49, %44, %50 : vector<16x128xi1>, vector<16x128xf32>
      %52 = arith.mulf %51, %51 : vector<16x128xf32>
      %cst_27 = arith.constant dense<0.000000e+00> : vector<16xf32>
      %53 = vector.multi_reduction <add>, %52, %cst_27 [1] : vector<16x128xf32> to vector<16xf32>
      %54 = vector.shape_cast %53 : vector<16xf32> to vector<16x1xf32>
      %55 = math.rsqrt %54 : vector<16x1xf32>
      %cst_28 = arith.constant 0.000000e+00 : f32
      %56 = vector.broadcast %cst_28 : f32 to vector<16x1xf32>
      %57 = arith.select %47, %55, %56 : vector<16x1xi1>, vector<16x1xf32>
      %58 = vector.broadcast %57 : vector<16x1xf32> to vector<16x128xf32>
      %59 = arith.mulf %51, %58 : vector<16x128xf32>
      %cst_29 = arith.constant dense<0.000000e+00> : vector<128xf32>
      %60 = vector.multi_reduction <add>, %59, %cst_29 [0] : vector<16x128xf32> to vector<128xf32>
      %61 = vector.shape_cast %60 : vector<128xf32> to vector<1x128xf32>
      %62 = arith.index_cast %arg9 : i32 to index
      %c0_30 = arith.constant 0 : index
      %63 = vector.load %arg3[%62, %c0_30] : memref<4x128xf32, #tpu.memory_space<vmem>>, vector<1x128xf32>
      %c0_i32_31 = arith.constant 0 : i32
      %64 = arith.cmpi sgt, %35, %c0_i32_31 : i32
      %65 = vector.broadcast %37 : f32 to vector<1x128xf32>
      %66 = arith.mulf %61, %65 : vector<1x128xf32>
      %67 = arith.select %64, %66, %63 : vector<1x128xf32>
      %68 = arith.mulf %67, %67 : vector<1x128xf32>
      %cst_32 = arith.constant dense<0.000000e+00> : vector<1xf32>
      %69 = vector.multi_reduction <add>, %68, %cst_32 [1] : vector<1x128xf32> to vector<1xf32>
      %70 = vector.shape_cast %69 : vector<1xf32> to vector<1x1xf32>
      %71 = math.rsqrt %70 : vector<1x1xf32>
      %72 = vector.broadcast %71 : vector<1x1xf32> to vector<1x128xf32>
      %73 = arith.mulf %67, %72 : vector<1x128xf32>
      %74 = arith.index_cast %arg9 : i32 to index
      %c0_33 = arith.constant 0 : index
      %75 = vector.load %arg6[%74, %c0_33] : memref<4x128xf32, #tpu.memory_space<vmem>>, vector<1x128xf32>
      tpu.vector_store %arg6[%74, %c0_33], %73 {strides = array<i32>} : memref<4x128xf32, #tpu.memory_space<vmem>>, vector<1x128xf32>,
    }
    %c4_i32_3 = arith.constant 4 : i32
    %c0_4 = arith.constant 0 : index
    %c0_5 = arith.constant 0 : index
    %4 = vector.load %arg6[%c0_4, %c0_5] : memref<4x128xf32, #tpu.memory_space<vmem>>, vector<4x128xf32>
    %c0_6 = arith.constant 0 : index
    %c0_7 = arith.constant 0 : index
    %5 = vector.load %arg3[%c0_6, %c0_7] : memref<4x128xf32, #tpu.memory_space<vmem>>, vector<4x128xf32>
    %cst = arith.constant dense<0.000000e+00> : vector<4x4xf32>
    %6 = tpu.matmul %4, %5, %cst {dimension_numbers = #tpu.dot_dimension_numbers<[1], [1], [0], [0], [0, 0, 1, 0], [], []>} : vector<4x128xf32>, vector<4x128xf32>, vector<4x4xf32> -> vector<4x4xf32>
    %cst_8 = arith.constant 5.000000e+00 : f32
    %7 = vector.broadcast %cst_8 : f32 to vector<4x4xf32>
    %8 = arith.mulf %6, %7 : vector<4x4xf32>
    %9 = arith.mulf %4, %5 : vector<4x128xf32>
    %cst_9 = arith.constant dense<0.000000e+00> : vector<4xf32>
    %10 = vector.multi_reduction <add>, %9, %cst_9 [1] : vector<4x128xf32> to vector<4xf32>
    %11 = vector.shape_cast %10 : vector<4xf32> to vector<4x1xf32>
    %cst_10 = arith.constant 5.000000e+00 : f32
    %12 = vector.broadcast %cst_10 : f32 to vector<4x1xf32>
    %13 = arith.mulf %11, %12 : vector<4x1xf32>
    %cst_11 = arith.constant dense<0xFF800000> : vector<4xf32>
    %14 = vector.multi_reduction <maximumf>, %8, %cst_11 [1] : vector<4x4xf32> to vector<4xf32>
    %15 = vector.shape_cast %14 : vector<4xf32> to vector<4x1xf32>
    %16 = vector.broadcast %15 : vector<4x1xf32> to vector<4x4xf32>
    %17 = arith.subf %8, %16 : vector<4x4xf32>
    %18 = math.exp %17 : vector<4x4xf32>
    %cst_12 = arith.constant dense<0.000000e+00> : vector<4xf32>
    %19 = vector.multi_reduction <add>, %18, %cst_12 [1] : vector<4x4xf32> to vector<4xf32>
    %20 = vector.shape_cast %19 : vector<4xf32> to vector<4x1xf32>
    %21 = math.log %20 : vector<4x1xf32>
    %22 = arith.addf %21, %15 : vector<4x1xf32>
    %23 = arith.subf %22, %13 : vector<4x1xf32>
    %cst_13 = arith.constant dense<0.000000e+00> : vector<1xf32>
    %24 = vector.multi_reduction <add>, %23, %cst_13 [0] : vector<4x1xf32> to vector<1xf32>
    %25 = vector.shape_cast %24 : vector<1xf32> to vector<1x1xf32>
    %cst_14 = arith.constant 2.500000e-02 : f32
    %26 = vector.broadcast %cst_14 : f32 to vector<1x1xf32>
    %27 = arith.mulf %25, %26 : vector<1x1xf32>
    %c0_15 = arith.constant 0 : index
    %c0_16 = arith.constant 0 : index
    %28 = vector.load %arg5[%c0_15, %c0_16] : memref<1x1xf32, #tpu.memory_space<vmem>>, vector<1x1xf32>
    tpu.vector_store %arg5[%c0_15, %c0_16], %27 {strides = array<i32>} : memref<1x1xf32, #tpu.memory_space<vmem>>, vector<1x1xf32>,
    return
  }
}

</mosaic_0001>

<llo_original>
// kernel: tpu_custom_call.1
$region0: #{tpu_custom_call.1}
  #allocation0 [shape = 'u32[]', space=smem, size = 0x4, offset = 0x4, fixed_abs, tag = 'smem constant byte address 0x4 - core index']
  #allocation1 [shape = 'u32[144,128]{1,0:T(1,128)}', space=vmem, size = 0x12000, scoped, tag = 'internal scratch']
  #allocation2 [shape = 'f32[4,128]{1,0:T(4,128)}', space=vmem, size = 0x800, scoped, tag = 'scratch operand']
  #allocation3 [shape = 'f32[2,16,128]{2,1,0:T(8,128)}', space=vmem, size = 0x4000, scoped, tag = 'scratch operand']
  #allocation4 [shape = 's32[32]{0}', space=sflag, size = 0x80, scoped, tag = 'scratch operand']
  #allocation13 [shape = 's32[]', space=sflag, size = 0x4, offset = 0, fixed_abs, tag = 'sflag constant byte address 0x0 - dummy sync flag']
  #allocation14 [shape = 's32[]', space=sflag, size = 0x4, offset = 0, fixed_abs, tag = 'sflag constant byte address 0x0 - dummy sync flag']
  #allocation15 [shape = 'u32[]', space=smem, size = 0x4, offset = 0x44, fixed_abs, tag = 'smem constant byte address 0x44 - assertion arg 0']
  #allocation16 [shape = 'u32[]', space=smem, size = 0x4, offset = 0x48, fixed_abs, tag = 'smem constant byte address 0x48 - assertion arg 1']
  #allocation17 [shape = 's32[]', space=sflag, size = 0x4, offset = 0, fixed_abs, tag = 'sflag constant byte address 0x0 - dummy sync flag']
  #allocation18 [shape = 's32[]', space=sflag, size = 0x4, offset = 0, fixed_abs, tag = 'sflag constant byte address 0x0 - dummy sync flag']
  %s0 = inlined_call_operand.hbm [shape: s32[64], index: 0, kind: input, shape index: {}]
  %s1 = inlined_call_operand.vmem [shape: s32[4], index: 1, kind: input, shape index: {}]
  %s2 = inlined_call_operand.hbm [shape: f32[4], index: 2, kind: input, shape index: {}]
  %s3 = inlined_call_operand.vmem [shape: f32[4,128], index: 3, kind: input, shape index: {}]
  %s4 = inlined_call_operand.hbm [shape: f32[32,128], index: 4, kind: input, shape index: {}]
  %s5 = inlined_call_operand.hbm [shape: f32[1,1], index: 5, kind: output, shape index: {}]
  %s6 = sld [smem:[#allocation0]]
  $region78: #{tpu_custom_call.1} parent=0
    _
  %s8 = ssub.s32 1, %s6
  %s9 = scalar_select 0, %s8, %s6
  $region1: #{tpu_custom_call.1} parent=0
    #allocation5 [shape = 'u8[512]{0}', space=smem, size = 0x200, scoped, tag = 'input window, operand 0, single buffered']
    #allocation6 [shape = 's32[1]{0}', space=sflag, size = 0x4, scoped, tag = 'scoped memory for tpu_custom_call.1']
    #allocation7 [shape = 's32[1]{0}', space=sflag, size = 0x4, scoped, tag = 'scoped memory for tpu_custom_call.1']
    #allocation8 [shape = 's32[1]{0}', space=sflag, size = 0x4, scoped, tag = 'scoped memory for tpu_custom_call.1']
    #allocation9 [shape = 'u8[512]{0}', space=smem, size = 0x200, scoped, tag = 'input window, operand 1, single buffered']
    #allocation10 [shape = 'u8[512]{0}', space=smem, size = 0x200, scoped, tag = 'input window, operand 2, single buffered']
    #allocation11 [shape = 's32[1]{0}', space=sflag, size = 0x4, scoped, tag = 'scoped memory for tpu_custom_call.1']
    #allocation12 [shape = 'u8[512]{0}', space=vmem, size = 0x400, scoped, tag = 'output window, operand 0, single buffered']
    %10 = vsyncpa [#allocation7], 0
    %11 = vsyncpa [#allocation8], 0
    %12 = vsyncpa [#allocation11], 0
    %13 = vsyncpa [#allocation6], 0
    // Predicated region
    $region2: #{tpu_custom_call.1} parent=1 // pred_check
      _
    $region3: #{tpu_custom_call.1} parent=1 // pred_check_branch
      %15 = sbr.rel (0) target = $region5
    $region4: #{tpu_custom_call.1} parent=1 // pred_region
      %s17 = ssub.s32 16, 16
      %18 = vsyncadd [#allocation7], %s17
      %21 = dma.hbm_to_smem %s0, 16, [#allocation5], [#allocation7]
    $region5: #{tpu_custom_call.1} parent=1 // pred_fallthru
      _
    // Predicated region
    $region6: #{tpu_custom_call.1} parent=1 // pred_check
      _
    $region7: #{tpu_custom_call.1} parent=1 // pred_check_branch
      %23 = sbr.rel (0) target = $region9
    $region8: #{tpu_custom_call.1} parent=1 // pred_region
      %s25 = ssub.s32 16, 16
      %26 = vsyncadd [#allocation8], %s25
      %s28 = sshll.u32 %s1, 4
      %s29 = int_to_ptr.vmem [resolvable:$true] %s28
      %31 = dma.vmem_to_smem %s29, 16, [#allocation9], [#allocation8]
    $region9: #{tpu_custom_call.1} parent=1 // pred_fallthru
      _
    // Predicated region
    $region10: #{tpu_custom_call.1} parent=1 // pred_check
      _
    $region11: #{tpu_custom_call.1} parent=1 // pred_check_branch
      %33 = sbr.rel (0) target = $region13
    $region12: #{tpu_custom_call.1} parent=1 // pred_region
      %s35 = ssub.s32 16, 16
      %36 = vsyncadd [#allocation11], %s35
      %39 = dma.hbm_to_smem %s2, 16, [#allocation10], [#allocation11]
    $region13: #{tpu_custom_call.1} parent=1 // pred_fallthru
      _
    // Predicated region
    $region14: #{tpu_custom_call.1} parent=1 // pred_check
      _
    $region15: #{tpu_custom_call.1} parent=1 // pred_check_branch
      %41 = sbr.rel (0) target = $region17
    $region16: #{tpu_custom_call.1} parent=1 // pred_region
      _
    $region17: #{tpu_custom_call.1} parent=1 // pred_fallthru
      _
    // Predicated region
    $region18: #{tpu_custom_call.1} parent=1 // pred_check
      _
    $region19: #{tpu_custom_call.1} parent=1 // pred_check_branch
      %43 = sbr.rel (0) target = $region21
    $region20: #{tpu_custom_call.1} parent=1 // pred_region
      %44 = dma.done [#allocation7], 16
    $region21: #{tpu_custom_call.1} parent=1 // pred_fallthru
      _
    // Predicated region
    $region22: #{tpu_custom_call.1} parent=1 // pred_check
      _
    $region23: #{tpu_custom_call.1} parent=1 // pred_check_branch
      %46 = sbr.rel (0) target = $region25
    $region24: #{tpu_custom_call.1} parent=1 // pred_region
      %47 = dma.done [#allocation8], 16
    $region25: #{tpu_custom_call.1} parent=1 // pred_fallthru
      _
    // Predicated region
    $region26: #{tpu_custom_call.1} parent=1 // pred_check
      _
    $region27: #{tpu_custom_call.1} parent=1 // pred_check_branch
      %49 = sbr.rel (0) target = $region29
    $region28: #{tpu_custom_call.1} parent=1 // pred_region
      %50 = dma.done [#allocation11], 16
    $region29: #{tpu_custom_call.1} parent=1 // pred_fallthru
      _
    %51 = sfence
    %s52 = sld [smem:[#allocation9]]
    // While loop
    $region30: #{tpu_custom_call.1} parent=1 // loop_pre_header
      _
    $region31: #{tpu_custom_call.1} parent=1 // loop_header
      %s54 = sphi 0, %s56
      %p55 = scmp.ge.s32.totalorder %s54, %s52
    $region32: #{tpu_custom_call.1} parent=1 // loop_header_branch
      %58 = sbr.rel (%p55) target = $region36
    $region33: #{tpu_custom_call.1} parent=1 // loop_body
      %s59 = sld [smem:[#allocation5 + %s54]]
      %p60 = scmp.gt.s32.totalorder %s59, 0
      %s61 = scalar_select %p60, %s59, 0
      %s62 = smul.addr %s61, 16
      %s63 = scalar_lea.hbm %s4, %s62
      %s64 = scalar_lea.vmem [#allocation3], %s54
      %s65 = scalar_lea.sflag [#allocation4], %s54
      // Predicated region
      $region37: #{tpu_custom_call.1} parent=33 // pred_check
        _
      $region38: #{tpu_custom_call.1} parent=33 // pred_check_branch
        %67 = sbr.rel target = $region40
      $region39: #{tpu_custom_call.1} parent=33 // pred_region
        %68 = sst [smem:[#allocation15]] [#allocation14]
        %69 = sst [smem:[#allocation16]] [#allocation13]
      $region40: #{tpu_custom_call.1} parent=33 // pred_fallthru
        _
      %71 = shalt.err (0)
      %s73 = sshll.u32 %s64, 4
      %s74 = int_to_ptr.vmem [resolvable:$true] %s73
      %76 = dma.hbm_to_vmem [thread:$0]  %s63, 16, %s74, %s65
    $region34: #{tpu_custom_call.1} parent=1 // loop_footer
      %s56 = sadd.s32 %s54, 1
    $region35: #{tpu_custom_call.1} parent=1 // loop_footer_branch
      %53 = sbr.rel target = $region31
    $region36: #{tpu_custom_call.1} parent=1 // loop_exit
      _
    loop: start=0, step=1, limit=4
    $region41: #{tpu_custom_call.1} parent=1 // loop_pre_header
      _
    $region42: #{tpu_custom_call.1} parent=1 // loop_header
      %s78 = sphi 0, %s82
      %p79 = scmp.ge.s32.totalorder %s78, 4
    $region43: #{tpu_custom_call.1} parent=1 // loop_header_branch
      %81 = sbr.rel (%p79) target = $region47
    $region44: #{tpu_custom_call.1} parent=1 // loop_body
      %s83 = sand.u32 %s78, 1
      %s84 = sadd.s32 %s78, 1
      %p85 = scmp.lt.s32.totalorder %s84, 4
      // Predicated region
      $region48: #{tpu_custom_call.1} parent=44 // pred_check
        %p86 = pneg %p85
      $region49: #{tpu_custom_call.1} parent=44 // pred_check_branch
        %88 = sbr.rel (%p86) target = $region51
      $region50: #{tpu_custom_call.1} parent=44 // pred_region
        %s89 = ssub.s32 1, %s83
        %s90 = sld [smem:[#allocation9 + %s84]]
        // While loop
        $region52: #{tpu_custom_call.1} parent=50 // loop_pre_header
          _
        $region53: #{tpu_custom_call.1} parent=50 // loop_header
          %s92 = sphi 0, %s94
          %p93 = scmp.ge.s32.totalorder %s92, %s90
        $region54: #{tpu_custom_call.1} parent=50 // loop_header_branch
          %96 = sbr.rel (%p93) target = $region58
        $region55: #{tpu_custom_call.1} parent=50 // loop_body
          %s97 = smul.u32 %s84, 16
          %s98 = sadd.s32 %s97, %s92
          %s99 = sld [smem:[#allocation5 + %s98]]
          %p100 = scmp.gt.s32.totalorder %s99, 0
          %s101 = scalar_select %p100, %s99, 0
          %s102 = smul.addr %s101, 16
          %s103 = scalar_lea.hbm %s4, %s102
          %s104 = smul.u32 %s89, 16
          %s105 = sadd.s32 %s92, %s104
          %s106 = scalar_lea.vmem [#allocation3], %s105
          %s107 = scalar_lea.sflag [#allocation4], %s105
          // Predicated region
          $region59: #{tpu_custom_call.1} parent=55 // pred_check
            _
          $region60: #{tpu_custom_call.1} parent=55 // pred_check_branch
            %109 = sbr.rel target = $region62
          $region61: #{tpu_custom_call.1} parent=55 // pred_region
            %110 = sst [smem:[#allocation15]] [#allocation18]
            %111 = sst [smem:[#allocation16]] [#allocation17]
          $region62: #{tpu_custom_call.1} parent=55 // pred_fallthru
            _
          %113 = shalt.err (0)
          %s115 = sshll.u32 %s106, 4
          %s116 = int_to_ptr.vmem [resolvable:$true] %s115
          %118 = dma.hbm_to_vmem [thread:$0]  %s103, 16, %s116, %s107
        $region56: #{tpu_custom_call.1} parent=50 // loop_footer
          %s94 = sadd.s32 %s92, 1
        $region57: #{tpu_custom_call.1} parent=50 // loop_footer_branch
          %91 = sbr.rel target = $region53
        $region58: #{tpu_custom_call.1} parent=50 // loop_exit
          _
      $region51: #{tpu_custom_call.1} parent=44 // pred_fallthru
        _
      %s119 = sld [smem:[#allocation9 + %s78]]
      %s120 = sld [smem:[#allocation10 + %s78]]
      // While loop
      $region63: #{tpu_custom_call.1} parent=44 // loop_pre_header
        _
      $region64: #{tpu_custom_call.1} parent=44 // loop_header
        %s122 = sphi 0, %s124
        %p123 = scmp.ge.s32.totalorder %s122, %s119
      $region65: #{tpu_custom_call.1} parent=44 // loop_header_branch
        %126 = sbr.rel (%p123) target = $region69
      $region66: #{tpu_custom_call.1} parent=44 // loop_body
        %s127 = smul.u32 %s78, 16
        %s128 = sadd.s32 %s127, %s122
        %s129 = sld [smem:[#allocation5 + %s128]]
        %s130 = smul.u32 %s83, 16
        %s131 = sadd.s32 %s122, %s130
        %s132 = scalar_lea.sflag [#allocation4], %s131
        %s133 = smul.u32 1, 1
        %s134 = sshll.u32 %s133, 4
        %135 = dma.done %s132, %s134
      $region67: #{tpu_custom_call.1} parent=44 // loop_footer
        %s124 = sadd.s32 %s122, 1
      $region68: #{tpu_custom_call.1} parent=44 // loop_footer_branch
        %121 = sbr.rel target = $region64
      $region69: #{tpu_custom_call.1} parent=44 // loop_exit
        _
      %s136 = smul.u32 %s83, 16
      %s137 = scalar_lea.vmem [#allocation3], %s136
      %v138 = vld [vmem:[%s137] sm:$0xff]
      %v139 = vld [vmem:[%s137 + $0x8] sm:$0xff]
      %v140 = vlaneseq
      %v141 = vshrl.u32 %v140, 7
      %v142 = vadd.s32 %v141, 8
      %v143 = vstv %s119
      %vm144 = vcmp.lt.s32.totalorder %v141, %v143
      %vm145 = vcmp.lt.s32.totalorder %v142, %v143
      %v146 = vsel %vm144, 1, 0
      %v147 = vsel %vm145, 1, 0
      %vm148 = vcmp.eq.s32.totalorder %v146, 1
      %vm149 = vcmp.eq.s32.totalorder %v147, 1
      %v150 = vsel %vm148, %v138, 0.0
      %v151 = vsel %vm149, %v139, 0.0
      %v152 = vmul.f32 %v150, %v150
      %v153 = vmul.f32 %v151, %v151
      %154 = vadd.xlane.f32.xlu0 %v152
      %v155 = vpop.xlane.xlu0 %154
      %156 = vadd.xlane.f32.xlu0 %v153
      %v157 = vpop.xlane.xlu0 %156
      %v158 = vrsqrt.pop %v155
      %v159 = vrsqrt.pop %v157
      %v160 = vsel %vm144, %v158, 0.0
      %v161 = vsel %vm145, %v159, 0.0
      %v162 = vmul.f32 %v150, %v160
      %v163 = vmul.f32 %v151, %v161
      %v164 = vadd.f32 %v162, %v163
      %v165 = vrot.slane %v164, 4
      %v166 = vadd.f32 %v164, %v165
      %v167 = vrot.slane %v166, 2
      %v168 = vadd.f32 %v166, %v167
      %v169 = vrot.slane %v168, 1
      %v170 = vadd.f32 %v168, %v169
      %s171 = scalar_lea.vmem %s3, %s78
      %v172 = vld [vmem:[%s171] sm:$0x1]
      %p173 = scmp.gt.s32.totalorder %s119, 0
      %v174 = vstv %s120
      %v175 = vmul.f32 %v170, %v174
      %s176 = scalar_select %p173, 1, 0
      %v177 = vstv %s176
      %vm178 = vcmp.eq.s32.totalorder %v177, 1
      %v179 = vsel %vm178, %v175, %v172
      %v180 = vmul.f32 %v179, %v179
      %vm181 = vcmask 1040384
      %v182 = vsel %vm181, %v180, 0.0
      %183 = vadd.xlane.f32.xlu0 %v182
      %v184 = vpop.xlane.xlu0 %183
      %v185 = vrsqrt.pop %v184
      %v186 = vmul.f32 %v179, %v185
      %s187 = scalar_lea.vmem [#allocation2], %s78
      %188 = vst [vmem:[%s187] sm:$0x1] %v186
    $region45: #{tpu_custom_call.1} parent=1 // loop_footer
      %s82 = sadd.s32 1, %s78
    $region46: #{tpu_custom_call.1} parent=1 // loop_footer_branch
      %77 = sbr.rel target = $region42
    $region47: #{tpu_custom_call.1} parent=1 // loop_exit
      _
    %v189 = vld [vmem:[#allocation2] sm:$0xf]
    %v190 = vld [vmem:[%s3] sm:$0xf]
    %191 = vmatprep.subr.mxu0 0.0
    %192 = vmatpush1.xpose.msra.mxu0 0.0
    %193 = vmatprep.subr.mxu0 0.0
    %194 = vmatpush1.xpose.msra.mxu0 0.0
    %195 = vmatprep.subr.mxu0 0.0
    %196 = vmatpush1.xpose.msra.mxu0 0.0
    %197 = vmatprep.subr.mxu0 0.0
    %198 = vmatpush1.xpose.msra.mxu0 0.0
    %199 = vmatprep.subr.mxu0 0.0
    %200 = vmatpush1.xpose.msra.mxu0 0.0
    %201 = vmatprep.subr.mxu0 0.0
    %202 = vmatpush1.xpose.msra.mxu0 0.0
    %203 = vmatprep.subr.mxu0 0.0
    %204 = vmatpush1.xpose.msra.mxu0 0.0
    %205 = vmatprep.subr.mxu0 0.0
    %206 = vmatpush1.xpose.msra.mxu0 0.0
    %207 = vmatprep.subr.mxu0 0.0
    %208 = vmatpush1.xpose.msra.mxu0 0.0
    %209 = vmatprep.subr.mxu0 0.0
    %210 = vmatpush1.xpose.msra.mxu0 0.0
    %211 = vmatprep.subr.mxu0 0.0
    %212 = vmatpush1.xpose.msra.mxu0 0.0
    %213 = vmatprep.subr.mxu0 0.0
    %214 = vmatpush1.xpose.msra.mxu0 0.0
    %215 = vmatprep.subr.mxu0 0.0
    %216 = vmatpush1.xpose.msra.mxu0 0.0
    %217 = vmatprep.subr.mxu0 0.0
    %218 = vmatpush1.xpose.msra.mxu0 0.0
    %219 = vmatprep.subr.mxu0 0.0
    %220 = vmatpush1.xpose.msra.mxu0 0.0
    %221 = vmatprep.subr.mxu0 0.0
    %222 = vmatpush1.xpose.msra.mxu0 %v190
    %223 = vmatprep.subr.mxu0 0.0
    %224 = vmatpush2.xpose.msra.mxu0 0.0
    %225 = vmatprep.subr.mxu0 0.0
    %226 = vmatpush2.xpose.msra.mxu0 0.0
    %227 = vmatprep.subr.mxu0 0.0
    %228 = vmatpush2.xpose.msra.mxu0 0.0
    %229 = vmatprep.subr.mxu0 0.0
    %230 = vmatpush2.xpose.msra.mxu0 0.0
    %231 = vmatprep.subr.mxu0 0.0
    %232 = vmatpush2.xpose.msra.mxu0 0.0
    %233 = vmatprep.subr.mxu0 0.0
    %234 = vmatpush2.xpose.msra.mxu0 0.0
    %235 = vmatprep.subr.mxu0 0.0
    %236 = vmatpush2.xpose.msra.mxu0 0.0
    %237 = vmatprep.subr.mxu0 0.0
    %238 = vmatpush2.xpose.msra.mxu0 0.0
    %239 = vmatprep.subr.mxu0 0.0
    %240 = vmatpush2.xpose.msra.mxu0 0.0
    %241 = vmatprep.subr.mxu0 0.0
    %242 = vmatpush2.xpose.msra.mxu0 0.0
    %243 = vmatprep.subr.mxu0 0.0
    %244 = vmatpush2.xpose.msra.mxu0 0.0
    %245 = vmatprep.subr.mxu0 0.0
    %246 = vmatpush2.xpose.msra.mxu0 0.0
    %247 = vmatprep.subr.mxu0 0.0
    %248 = vmatpush2.xpose.msra.mxu0 0.0
    %249 = vmatprep.subr.mxu0 0.0
    %250 = vmatpush2.xpose.msra.mxu0 0.0
    %251 = vmatprep.subr.mxu0 0.0
    %252 = vmatpush2.xpose.msra.mxu0 0.0
    %253 = vmatprep.subr.mxu0 0.0
    %254 = vmatpush2.xpose.msra.mxu0 0.0
    %255 = vmatprep.mubr.f32.mxu0 0.0
    %256 = vmatmul.mubr.f32.gmra.mxu0 %v189
    %v257 = vpop.f32.mrf.mxu0
    %v258 = vadd.f32 0.0, %v257
    %v259 = vpop.f32.mrf.mxu0
    %260 = vdwg.mxu0
    %v261 = vmul.f32 %v258, 5.0
    %v262 = vmul.f32 %v189, %v190
    %vm263 = vcmask 1043456
    %v264 = vsel %vm263, %v262, 0.0
    %265 = vadd.xlane.f32.xlu0 %v264
    %v266 = vpop.xlane.xlu0 %265
    %v267 = vmul.f32 %v266, 5.0
    %vm268 = vcmask 27648
    %v269 = vsel %vm268, %v261, -inf
    %270 = vmax.xlane.f32.xlu0 %v269
    %v271 = vpop.xlane.xlu0 %270
    %v272 = vsub.f32 %v261, %v271
    %v273 = vmul.f32 %v272, 1.442695
    %v274 = vpow.pop %v273
    %v275 = vsel %vm268, %v274, 0.0
    %276 = vadd.xlane.f32.xlu0 %v275
    %v277 = vpop.xlane.xlu0 %276
    %v278 = vlog2.pop %v277
    %v279 = vmul.f32 %v278, 0.6931472
    %v280 = vadd.f32 %v279, %v271
    %v281 = vsub.f32 %v280, %v267
    %v282 = vsel %vm263, %v281, 0.0
    %v283 = vrot.slane %v282, 4
    %v284 = vadd.f32 %v282, %v283
    %v285 = vrot.slane %v284, 2
    %v286 = vadd.f32 %v284, %v285
    %v287 = vrot.slane %v286, 1
    %v288 = vadd.f32 %v286, %v287
    %v289 = vmul.f32 %v288, 0.025
    %vm290 = vcmask 0
    %291 = vst.msk [vmem:[#allocation12] sm:$0x1] %vm290, %v289
    // Predicated region
    $region70: #{tpu_custom_call.1} parent=1 // pred_check
      _
    $region71: #{tpu_custom_call.1} parent=1 // pred_check_branch
      %293 = sbr.rel (0) target = $region73
    $region72: #{tpu_custom_call.1} parent=1 // pred_region
      %s295 = ssub.s32 16, 16
      %296 = vsyncadd [#allocation6], %s295
      %s298 = sshll.u32 [#allocation12], 4
      %s299 = int_to_ptr.vmem [resolvable:$true] %s298
      %301 = dma.vmem_to_hbm [thread:$0]  %s299, 16, %s5, [#allocation6]
    $region73: #{tpu_custom_call.1} parent=1 // pred_fallthru
      _
    // Predicated region
    $region74: #{tpu_custom_call.1} parent=1 // pred_check
      _
    $region75: #{tpu_custom_call.1} parent=1 // pred_check_branch
      %303 = sbr.rel (0) target = $region77
    $region76: #{tpu_custom_call.1} parent=1 // pred_region
      %304 = dma.done [#allocation6], 16
    $region77: #{tpu_custom_call.1} parent=1 // pred_fallthru
      _
    %305 = vsyncpa [#allocation6], 1
    %306 = vsyncpa [#allocation7], 1
    %307 = vsyncpa [#allocation11], 1
    %308 = vsyncpa [#allocation8], 1
  %309 = vsyncmov [#allocation4]
  %s310 = vpop.sfrf %309
  %p311 = scmp.eq.s32.totalorder %s310, 0
  %p312 = pneg %p311
  %314 = shalt.err (%p312)
  %s315 = scalar_lea.sflag [#allocation4], 1
  %316 = vsyncmov %s315
  %s317 = vpop.sfrf %316
  %p318 = scmp.eq.s32.totalorder %s317, 0
  %p319 = pneg %p318
  %321 = shalt.err (%p319)
  %s322 = scalar_lea.sflag [#allocation4], 2
  %323 = vsyncmov %s322
  %s324 = vpop.sfrf %323
  %p325 = scmp.eq.s32.totalorder %s324, 0
  %p326 = pneg %p325
  %328 = shalt.err (%p326)
  %s329 = scalar_lea.sflag [#allocation4], 3
  %330 = vsyncmov %s329
  %s331 = vpop.sfrf %330
  %p332 = scmp.eq.s32.totalorder %s331, 0
  %p333 = pneg %p332
  %335 = shalt.err (%p333)
  %s336 = scalar_lea.sflag [#allocation4], 4
  %337 = vsyncmov %s336
  %s338 = vpop.sfrf %337
  %p339 = scmp.eq.s32.totalorder %s338, 0
  %p340 = pneg %p339
  %342 = shalt.err (%p340)
  %s343 = scalar_lea.sflag [#allocation4], 5
  %344 = vsyncmov %s343
  %s345 = vpop.sfrf %344
  %p346 = scmp.eq.s32.totalorder %s345, 0
  %p347 = pneg %p346
  %349 = shalt.err (%p347)
  %s350 = scalar_lea.sflag [#allocation4], 6
  %351 = vsyncmov %s350
  %s352 = vpop.sfrf %351
  %p353 = scmp.eq.s32.totalorder %s352, 0
  %p354 = pneg %p353
  %356 = shalt.err (%p354)
  %s357 = scalar_lea.sflag [#allocation4], 7
  %358 = vsyncmov %s357
  %s359 = vpop.sfrf %358
  %p360 = scmp.eq.s32.totalorder %s359, 0
  %p361 = pneg %p360
  %363 = shalt.err (%p361)
  %s364 = scalar_lea.sflag [#allocation4], 8
  %365 = vsyncmov %s364
  %s366 = vpop.sfrf %365
  %p367 = scmp.eq.s32.totalorder %s366, 0
  %p368 = pneg %p367
  %370 = shalt.err (%p368)
  %s371 = scalar_lea.sflag [#allocation4], 9
  %372 = vsyncmov %s371
  %s373 = vpop.sfrf %372
  %p374 = scmp.eq.s32.totalorder %s373, 0
  %p375 = pneg %p374
  %377 = shalt.err (%p375)
  %s378 = scalar_lea.sflag [#allocation4], 10
  %379 = vsyncmov %s378
  %s380 = vpop.sfrf %379
  %p381 = scmp.eq.s32.totalorder %s380, 0
  %p382 = pneg %p381
  %384 = shalt.err (%p382)
  %s385 = scalar_lea.sflag [#allocation4], 11
  %386 = vsyncmov %s385
  %s387 = vpop.sfrf %386
  %p388 = scmp.eq.s32.totalorder %s387, 0
  %p389 = pneg %p388
  %391 = shalt.err (%p389)
  %s392 = scalar_lea.sflag [#allocation4], 12
  %393 = vsyncmov %s392
  %s394 = vpop.sfrf %393
  %p395 = scmp.eq.s32.totalorder %s394, 0
  %p396 = pneg %p395
  %398 = shalt.err (%p396)
  %s399 = scalar_lea.sflag [#allocation4], 13
  %400 = vsyncmov %s399
  %s401 = vpop.sfrf %400
  %p402 = scmp.eq.s32.totalorder %s401, 0
  %p403 = pneg %p402
  %405 = shalt.err (%p403)
  %s406 = scalar_lea.sflag [#allocation4], 14
  %407 = vsyncmov %s406
  %s408 = vpop.sfrf %407
  %p409 = scmp.eq.s32.totalorder %s408, 0
  %p410 = pneg %p409
  %412 = shalt.err (%p410)
  %s413 = scalar_lea.sflag [#allocation4], 15
  %414 = vsyncmov %s413
  %s415 = vpop.sfrf %414
  %p416 = scmp.eq.s32.totalorder %s415, 0
  %p417 = pneg %p416
  %419 = shalt.err (%p417)
  %s420 = scalar_lea.sflag [#allocation4], 16
  %421 = vsyncmov %s420
  %s422 = vpop.sfrf %421
  %p423 = scmp.eq.s32.totalorder %s422, 0
  %p424 = pneg %p423
  %426 = shalt.err (%p424)
  %s427 = scalar_lea.sflag [#allocation4], 17
  %428 = vsyncmov %s427
  %s429 = vpop.sfrf %428
  %p430 = scmp.eq.s32.totalorder %s429, 0
  %p431 = pneg %p430
  %433 = shalt.err (%p431)
  %s434 = scalar_lea.sflag [#allocation4], 18
  %435 = vsyncmov %s434
  %s436 = vpop.sfrf %435
  %p437 = scmp.eq.s32.totalorder %s436, 0
  %p438 = pneg %p437
  %440 = shalt.err (%p438)
  %s441 = scalar_lea.sflag [#allocation4], 19
  %442 = vsyncmov %s441
  %s443 = vpop.sfrf %442
  %p444 = scmp.eq.s32.totalorder %s443, 0
  %p445 = pneg %p444
  %447 = shalt.err (%p445)
  %s448 = scalar_lea.sflag [#allocation4], 20
  %449 = vsyncmov %s448
  %s450 = vpop.sfrf %449
  %p451 = scmp.eq.s32.totalorder %s450, 0
  %p452 = pneg %p451
  %454 = shalt.err (%p452)
  %s455 = scalar_lea.sflag [#allocation4], 21
  %456 = vsyncmov %s455
  %s457 = vpop.sfrf %456
  %p458 = scmp.eq.s32.totalorder %s457, 0
  %p459 = pneg %p458
  %461 = shalt.err (%p459)
  %s462 = scalar_lea.sflag [#allocation4], 22
  %463 = vsyncmov %s462
  %s464 = vpop.sfrf %463
  %p465 = scmp.eq.s32.totalorder %s464, 0
  %p466 = pneg %p465
  %468 = shalt.err (%p466)
  %s469 = scalar_lea.sflag [#allocation4], 23
  %470 = vsyncmov %s469
  %s471 = vpop.sfrf %470
  %p472 = scmp.eq.s32.totalorder %s471, 0
  %p473 = pneg %p472
  %475 = shalt.err (%p473)
  %s476 = scalar_lea.sflag [#allocation4], 24
  %477 = vsyncmov %s476
  %s478 = vpop.sfrf %477
  %p479 = scmp.eq.s32.totalorder %s478, 0
  %p480 = pneg %p479
  %482 = shalt.err (%p480)
  %s483 = scalar_lea.sflag [#allocation4], 25
  %484 = vsyncmov %s483
  %s485 = vpop.sfrf %484
  %p486 = scmp.eq.s32.totalorder %s485, 0
  %p487 = pneg %p486
  %489 = shalt.err (%p487)
  %s490 = scalar_lea.sflag [#allocation4], 26
  %491 = vsyncmov %s490
  %s492 = vpop.sfrf %491
  %p493 = scmp.eq.s32.totalorder %s492, 0
  %p494 = pneg %p493
  %496 = shalt.err (%p494)
  %s497 = scalar_lea.sflag [#allocation4], 27
  %498 = vsyncmov %s497
  %s499 = vpop.sfrf %498
  %p500 = scmp.eq.s32.totalorder %s499, 0
  %p501 = pneg %p500
  %503 = shalt.err (%p501)
  %s504 = scalar_lea.sflag [#allocation4], 28
  %505 = vsyncmov %s504
  %s506 = vpop.sfrf %505
  %p507 = scmp.eq.s32.totalorder %s506, 0
  %p508 = pneg %p507
  %510 = shalt.err (%p508)
  %s511 = scalar_lea.sflag [#allocation4], 29
  %512 = vsyncmov %s511
  %s513 = vpop.sfrf %512
  %p514 = scmp.eq.s32.totalorder %s513, 0
  %p515 = pneg %p514
  %517 = shalt.err (%p515)
  %s518 = scalar_lea.sflag [#allocation4], 30
  %519 = vsyncmov %s518
  %s520 = vpop.sfrf %519
  %p521 = scmp.eq.s32.totalorder %s520, 0
  %p522 = pneg %p521
  %524 = shalt.err (%p522)
  %s525 = scalar_lea.sflag [#allocation4], 31
  %526 = vsyncmov %s525
  %s527 = vpop.sfrf %526
  %p528 = scmp.eq.s32.totalorder %s527, 0
  %p529 = pneg %p528
  %531 = shalt.err (%p529)

</llo_original>
